<compile_context>
chip_gen: v6e
topology: v6e:2x2x1
jax: 0.10.0
libtpu: 0.0.40
codegen_flags: <defaults>
</compile_context>

<pallas_src>
import jax
import jax.numpy as jnp
from jax import lax
from jax.experimental import pallas as pl
from jax.experimental.pallas import tpu as pltpu


def _round_up(x, m):
    return (x + m - 1) // m * m


def _num_tensorcores():
    """Best-effort TensorCores-per-chip query (2 on v7x, 1 on v5e/v6e).

    Falls back to 2: always emitting >= 2 grid steps costs one extra ~0.35us
    pipeline step on 1-TC chips but is required to use both cores on v7x.
    """
    try:
        info = pltpu.get_tpu_info()
        for attr in ("num_cores", "num_tensorcores", "tensorcores_per_chip",
                     "cores_per_chip"):
            v = getattr(info, attr, None)
            if isinstance(v, int) and 1 <= v <= 8:
                return v
    except Exception:
        pass
    return 2


def _spec(block_shape, index_map, buffers=None):
    """BlockSpec with an optional explicit pipeline buffer count (best effort)."""
    if buffers is not None:
        try:
            return pl.BlockSpec(block_shape, index_map,
                                pipeline_mode=pl.Buffered(buffers))
        except Exception:
            pass  # pipeline_mode/Buffered unavailable: fall back to default 2-deep
    return pl.BlockSpec(block_shape, index_map)


def critic_kernel(x_ref, w1_ref, b1_ref, w2_ref, b2_ref, w3_ref, b3_ref, q_ref):
    # x tile: (tile_m, in_dim); the cast is a no-op when the caller streams bf16.
    x = x_ref[...].astype(jnp.bfloat16)

    # fc1 + ReLU (MXU bf16 x bf16 -> f32; bias/ReLU on the VPU in f32).
    h1 = jnp.dot(x, w1_ref[...], preferred_element_type=jnp.float32)
    h1 = jnp.maximum(h1 + b1_ref[...], 0.0)

    # fc2 + ReLU.
    h2 = jnp.dot(h1.astype(jnp.bfloat16), w2_ref[...],
                 preferred_element_type=jnp.float32)
    h2 = jnp.maximum(h2 + b2_ref[...], 0.0)

    # fc3: contract the feature dim of w3 (1, dim_p) against the feature dim of
    # h2 (tile_m, dim_p) -> lane-dense (1, tile_m) row of q values (avoids the
    # N=1 matmul output and 1-lane masked stores).
    q = lax.dot_general(
        w3_ref[...], h2.astype(jnp.bfloat16),
        dimension_numbers=(((1,), (1,)), ((), ())),
        preferred_element_type=jnp.float32,
    )
    q_ref[...] = (q + b3_ref[0]).astype(q_ref.dtype)


def critic_forward(x, params, *, tile_m=None):
    """x: [batch, input_shape] (f32 or bf16) -> q: [batch, 1] float32.

    Pass x as bf16 to halve the streamed HBM traffic; accumulation is f32 in
    either case, so numerics are unchanged.
    """
    batch, in_dim = x.shape
    w1, b1 = params["w1"], params["b1"]
    w2, b2 = params["w2"], params["b2"]
    w3, b3 = params["w3"], params["b3"]
    dim_p = w1.shape[1]

    if tile_m is None:
        # >= num_tensorcores grid steps so the "parallel" batch axis can be
        # split across both TCs on v7x; otherwise as fat as possible (per-step
        # overhead ~0.35us; VMEM far from binding even at tile_m = 2048).
        ntc = _num_tensorcores()
        tile_m = max(128, min(2048, _round_up(pl.cdiv(batch, ntc), 128)))
    assert tile_m % 128 == 0 or tile_m == batch, (
        "tile_m must be a multiple of 128 (lane-dense q row) or equal batch")

    num_tiles = pl.cdiv(batch, tile_m)   # ragged final block; no x padding

    x_buffers = 3 if num_tiles >= 4 else None    # deeper x pipeline for big batches
    w_buffers = 1 if dim_p >= 512 else None      # single-buffer big resident weights

    def resident(a):  # same block every grid step -> stays in VMEM, no re-DMA
        nd = a.ndim
        return _spec(a.shape, lambda i: (0,) * nd, buffers=w_buffers)

    q_row = pl.pallas_call(
        critic_kernel,
        out_shape=jax.ShapeDtypeStruct((1, batch), jnp.float32),
        grid=(num_tiles,),
        in_specs=[
            _spec((tile_m, in_dim), lambda i: (i, 0), buffers=x_buffers),  # x (streamed)
            resident(w1), resident(b1),
            resident(w2), resident(b2),
            resident(w3),
            pl.BlockSpec(memory_space=pltpu.MemorySpace.SMEM),             # b3 scalar
        ],
        out_specs=pl.BlockSpec((1, tile_m), lambda i: (0, i)),             # lane-dense q
        compiler_params=pltpu.CompilerParams(
            dimension_semantics=("parallel",),                             # 2 TCs on v7x
        ),
    )(x, w1, b1, w2, b2, w3, b3)

    return q_row.reshape(batch, 1)


def init_critic_params(key, input_shape, critic_dim):
    """nn.Linear-style init U(-1/sqrt(fan_in), 1/sqrt(fan_in)).

    Weights stored [in, out] (transposed vs. PyTorch) with the hidden dim
    zero-padded to a multiple of 128; matmul weights bf16, biases f32.  The
    zero padding is numerically exact for this MLP (ReLU(0+0)=0 propagates).
    """
    dim_p = _round_up(critic_dim, 128)
    ks = jax.random.split(key, 6)

    def uniform(k, shape, fan_in):
        bound = 1.0 / jnp.sqrt(jnp.float32(fan_in))
        return jax.random.uniform(k, shape, jnp.float32, -bound, bound)

    pad = dim_p - critic_dim
    w1 = jnp.pad(uniform(ks[0], (input_shape, critic_dim), input_shape),
                 ((0, 0), (0, pad)))
    b1 = jnp.pad(uniform(ks[1], (1, critic_dim), input_shape), ((0, 0), (0, pad)))
    w2 = jnp.pad(uniform(ks[2], (critic_dim, critic_dim), critic_dim),
                 ((0, pad), (0, pad)))
    b2 = jnp.pad(uniform(ks[3], (1, critic_dim), critic_dim), ((0, 0), (0, pad)))
    w3 = jnp.pad(uniform(ks[4], (1, critic_dim), critic_dim), ((0, 0), (0, pad)))
    b3 = uniform(ks[5], (1,), critic_dim)

    return {
        "w1": w1.astype(jnp.bfloat16), "b1": b1,
        "w2": w2.astype(jnp.bfloat16), "b2": b2,
        "w3": w3.astype(jnp.bfloat16), "b3": b3,
    }


def critic_ref(x, params):
    """Pure-JAX reference mirroring the kernel's bf16-matmul / f32-accumulate numerics."""
    h1 = jnp.maximum(
        jnp.dot(x.astype(jnp.bfloat16), params["w1"],
                preferred_element_type=jnp.float32) + params["b1"], 0.0)
    h2 = jnp.maximum(
        jnp.dot(h1.astype(jnp.bfloat16), params["w2"],
                preferred_element_type=jnp.float32) + params["b2"], 0.0)
    q = jnp.dot(h2.astype(jnp.bfloat16), params["w3"].T,
                preferred_element_type=jnp.float32) + params["b3"]
    return q


if __name__ == "__main__":
    # Small shapes consistent with the module (flattened per-agent critic input).
    batch = 256          # many agent/timestep evaluations fused into one call
    input_shape = 48     # obs + state + action features, flattened
    critic_dim = 64      # args.critic_dim (zero-padded to 128 internally)

    key = jax.random.PRNGKey(0)
    k_x, k_p = jax.random.split(key)
    # Stream x in bf16: x is the only per-step HBM operand, so this halves the
    # dominant DMA volume; matmul numerics (bf16 inputs, f32 acc) are unchanged.
    x = jax.random.normal(k_x, (batch, input_shape), jnp.float32).astype(jnp.bfloat16)
    params = init_critic_params(k_p, input_shape, critic_dim)

    # Default heuristic -> >= 2 grid steps (exercises the pipelined multi-tile
    # path and the v7x megacore split; near-free on v5e/v6e).
    q = critic_forward(x, params)
    q = jax.block_until_ready(q)

    q_ref = jax.block_until_ready(critic_ref(x, params))
    assert q.shape == (batch, 1)
    assert jnp.allclose(q, q_ref, atol=1e-3, rtol=1e-3), (
        "mismatch vs reference, max abs err = "
        f"{float(jnp.max(jnp.abs(q - q_ref)))}")

    print("KERNEL_OK")
</pallas_src>

<mosaic_0001>
module attributes {stable_mosaic.version = 11 : i64} {
  func.func @critic_kernel(%arg0: i32, %arg1: memref<128x48xbf16, #tpu.memory_space<vmem>>, %arg2: memref<48x128xbf16, #tpu.memory_space<vmem>>, %arg3: memref<1x128xf32, #tpu.memory_space<vmem>>, %arg4: memref<128x128xbf16, #tpu.memory_space<vmem>>, %arg5: memref<1x128xf32, #tpu.memory_space<vmem>>, %arg6: memref<1x128xbf16, #tpu.memory_space<vmem>>, %arg7: memref<1xf32, #tpu.memory_space<smem>>, %arg8: memref<1x128xf32, #tpu.memory_space<vmem>>) attributes {dimension_semantics = [#tpu.dimension_semantics<parallel>], iteration_bounds = array<i64: 2>, scalar_prefetch = 0 : i64, scratch_operands = 0 : i64, tpu.core_type = #tpu.core_type<tc>, window_params = [{transform_indices = @transform_0, window_bounds = array<i64: 128, 48>}, {pipeline_mode = #tpu.pipeline_mode<synchronous>, transform_indices = @transform_1, window_bounds = array<i64: 48, 128>}, {pipeline_mode = #tpu.pipeline_mode<synchronous>, transform_indices = @transform_2, window_bounds = array<i64: 1, 128>}, {pipeline_mode = #tpu.pipeline_mode<synchronous>, transform_indices = @transform_3, window_bounds = array<i64: 128, 128>}, {pipeline_mode = #tpu.pipeline_mode<synchronous>, transform_indices = @transform_4, window_bounds = array<i64: 1, 128>}, {pipeline_mode = #tpu.pipeline_mode<synchronous>, transform_indices = @transform_5, window_bounds = array<i64: 1, 128>}, {transform_indices = @transform_6, window_bounds = array<i64: 1>}, {transform_indices = @transform_7, window_bounds = array<i64: 1, 128>}]} {
    %c0 = arith.constant 0 : index
    %c0_0 = arith.constant 0 : index
    %0 = vector.load %arg1[%c0, %c0_0] : memref<128x48xbf16, #tpu.memory_space<vmem>>, vector<128x48xbf16>
    %c0_1 = arith.constant 0 : index
    %c0_2 = arith.constant 0 : index
    %1 = vector.load %arg2[%c0_1, %c0_2] : memref<48x128xbf16, #tpu.memory_space<vmem>>, vector<48x128xbf16>
    %cst = arith.constant dense<0.000000e+00> : vector<128x128xf32>
    %2 = tpu.matmul %0, %1, %cst {dimension_numbers = #tpu.dot_dimension_numbers<[1], [0], [0], [1], [0, 0, 1, 1], [], []>} : vector<128x48xbf16>, vector<48x128xbf16>, vector<128x128xf32> -> vector<128x128xf32>
    %c0_3 = arith.constant 0 : index
    %c0_4 = arith.constant 0 : index
    %3 = vector.load %arg3[%c0_3, %c0_4] : memref<1x128xf32, #tpu.memory_space<vmem>>, vector<1x128xf32>
    %4 = vector.broadcast %3 : vector<1x128xf32> to vector<128x128xf32>
    %5 = arith.addf %2, %4 : vector<128x128xf32>
    %cst_5 = arith.constant 0.000000e+00 : f32
    %6 = vector.broadcast %cst_5 : f32 to vector<128x128xf32>
    %7 = arith.maximumf %5, %6 : vector<128x128xf32>
    %8 = arith.truncf %7 : vector<128x128xf32> to vector<128x128xbf16>
    %c0_6 = arith.constant 0 : index
    %c0_7 = arith.constant 0 : index
    %9 = vector.load %arg4[%c0_6, %c0_7] : memref<128x128xbf16, #tpu.memory_space<vmem>>, vector<128x128xbf16>
    %cst_8 = arith.constant dense<0.000000e+00> : vector<128x128xf32>
    %10 = tpu.matmul %8, %9, %cst_8 {dimension_numbers = #tpu.dot_dimension_numbers<[1], [0], [0], [1], [0, 0, 1, 1], [], []>} : vector<128x128xbf16>, vector<128x128xbf16>, vector<128x128xf32> -> vector<128x128xf32>
    %c0_9 = arith.constant 0 : index
    %c0_10 = arith.constant 0 : index
    %11 = vector.load %arg5[%c0_9, %c0_10] : memref<1x128xf32, #tpu.memory_space<vmem>>, vector<1x128xf32>
    %12 = vector.broadcast %11 : vector<1x128xf32> to vector<128x128xf32>
    %13 = arith.addf %10, %12 : vector<128x128xf32>
    %cst_11 = arith.constant 0.000000e+00 : f32
    %14 = vector.broadcast %cst_11 : f32 to vector<128x128xf32>
    %15 = arith.maximumf %13, %14 : vector<128x128xf32>
    %c0_12 = arith.constant 0 : index
    %c0_13 = arith.constant 0 : index
    %16 = vector.load %arg6[%c0_12, %c0_13] : memref<1x128xbf16, #tpu.memory_space<vmem>>, vector<1x128xbf16>
    %17 = arith.truncf %15 : vector<128x128xf32> to vector<128x128xbf16>
    %cst_14 = arith.constant dense<0.000000e+00> : vector<1x128xf32>
    %18 = tpu.matmul %16, %17, %cst_14 {dimension_numbers = #tpu.dot_dimension_numbers<[1], [1], [0], [0], [0, 0, 1, 0], [], []>} : vector<1x128xbf16>, vector<128x128xbf16>, vector<1x128xf32> -> vector<1x128xf32>
    %c0_15 = arith.constant 0 : index
    %19 = memref.load %arg7[%c0_15] : memref<1xf32, #tpu.memory_space<smem>>
    %20 = vector.broadcast %19 : f32 to vector<1x128xf32>
    %21 = arith.addf %18, %20 : vector<1x128xf32>
    %c0_16 = arith.constant 0 : index
    %c0_17 = arith.constant 0 : index
    %22 = vector.load %arg8[%c0_16, %c0_17] : memref<1x128xf32, #tpu.memory_space<vmem>>, vector<1x128xf32>
    tpu.vector_store %arg8[%c0_16, %c0_17], %21 {strides = array<i32>} : memref<1x128xf32, #tpu.memory_space<vmem>>, vector<1x128xf32>,
    return
  }
  func.func @transform_0(%arg0: i32) -> (i32, i32) {
    %c0_i32 = arith.constant 0 : i32
    %c0_i32_0 = arith.constant 0 : i32
    return %arg0, %c0_i32 : i32, i32
  }
  func.func @transform_1(%arg0: i32) -> (i32, i32) {
    %c0_i32 = arith.constant 0 : i32
    %c0_i32_0 = arith.constant 0 : i32
    %c0_i32_1 = arith.constant 0 : i32
    return %c0_i32, %c0_i32_0 : i32, i32
  }
  func.func @transform_2(%arg0: i32) -> (i32, i32) {
    %c0_i32 = arith.constant 0 : i32
    %c0_i32_0 = arith.constant 0 : i32
    %c0_i32_1 = arith.constant 0 : i32
    return %c0_i32, %c0_i32_0 : i32, i32
  }
  func.func @transform_3(%arg0: i32) -> (i32, i32) {
    %c0_i32 = arith.constant 0 : i32
    %c0_i32_0 = arith.constant 0 : i32
    %c0_i32_1 = arith.constant 0 : i32
    return %c0_i32, %c0_i32_0 : i32, i32
  }
  func.func @transform_4(%arg0: i32) -> (i32, i32) {
    %c0_i32 = arith.constant 0 : i32
    %c0_i32_0 = arith.constant 0 : i32
    %c0_i32_1 = arith.constant 0 : i32
    return %c0_i32, %c0_i32_0 : i32, i32
  }
  func.func @transform_5(%arg0: i32) -> (i32, i32) {
    %c0_i32 = arith.constant 0 : i32
    %c0_i32_0 = arith.constant 0 : i32
    %c0_i32_1 = arith.constant 0 : i32
    return %c0_i32, %c0_i32_0 : i32, i32
  }
  func.func @transform_6(%arg0: i32) -> i32 {
    %c0_i32 = arith.constant 0 : i32
    %c0_i32_0 = arith.constant 0 : i32
    return %c0_i32 : i32
  }
  func.func @transform_7(%arg0: i32) -> (i32, i32) {
    %c0_i32 = arith.constant 0 : i32
    %c0_i32_0 = arith.constant 0 : i32
    return %c0_i32, %arg0 : i32, i32
  }
}

</mosaic_0001>

<llo_original>
// kernel: tpu_custom_call.1
$region0: #{tpu_custom_call.1}
  #allocation0 [shape = 'u32[]', space=smem, size = 0x4, offset = 0x4, fixed_abs, tag = 'smem constant byte address 0x4 - core index']
  #allocation1 [shape = 'u32[144,128]{1,0:T(1,128)}', space=vmem, size = 0x12000, scoped, tag = 'internal scratch']
  #allocation2 [shape = 'f32[1]{0:T(128)S(6)}', space=smem, size = 0x200, scoped, tag = 'scoped memory for tpu_custom_call.1']
  %s0 = inlined_call_operand.vmem [shape: bf16[256,48], index: 0, kind: input, shape index: {}]
  %s1 = inlined_call_operand.vmem [shape: bf16[48,128], index: 1, kind: input, shape index: {}]
  %s2 = inlined_call_operand.vmem [shape: f32[1,128], index: 2, kind: input, shape index: {}]
  %s3 = inlined_call_operand.vmem [shape: bf16[128,128], index: 3, kind: input, shape index: {}]
  %s4 = inlined_call_operand.vmem [shape: f32[1,128], index: 4, kind: input, shape index: {}]
  %s5 = inlined_call_operand.vmem [shape: bf16[1,128], index: 5, kind: input, shape index: {}]
  %s6 = inlined_call_operand.<no memory space> [shape: f32[1], index: 6, kind: input, shape index: {}]
  %s7 = inlined_call_operand.hbm [shape: f32[1,256], index: 7, kind: output, shape index: {}]
  %s8 = sld [smem:[#allocation0]]
  $region61: #{tpu_custom_call.1} parent=0
    _
  %s10 = ssub.s32 1, %s8
  %s11 = scalar_select 0, %s10, %s8
  %12 = sst [smem:[#allocation2]] %s6
  $region1: #{tpu_custom_call.1} parent=0
    #allocation3 [shape = 'u8[1024]{0}', space=vmem, size = 0x400, scoped, tag = 'output window, operand 0']
    #allocation4 [shape = 's32[2]{0}', space=sflag, size = 0x8, scoped, tag = 'scoped memory for tpu_custom_call.1']
    %13 = vsyncpa [#allocation4], 0
    %s14 = scalar_lea.sflag [#allocation4], 1
    %15 = vsyncpa %s14, 0
    loop: start=0, step=1, limit=4
    $region2: #{tpu_custom_call.1} parent=1 // loop_pre_header
      _
    $region3: #{tpu_custom_call.1} parent=1 // loop_header
      %s17 = sphi 0, %s21
      %p18 = scmp.ge.s32.totalorder %s17, 4
      %s27 = sphi 0, %s29
      %s30 = sphi 0, %s27
      %s31 = sphi 0, %s30
      %s47 = sphi 0, %s31
      %s51 = sphi 0, %s51
      %s53 = sphi 0, %s51
      %s54 = sphi 0, %s53
      %s68 = sphi 0, %s54
      %s72 = sphi 0, %s72
      %s74 = sphi 0, %s72
      %s75 = sphi 0, %s74
      %s89 = sphi 0, %s75
      %s93 = sphi 0, %s93
      %s95 = sphi 0, %s93
      %s96 = sphi 0, %s95
      %s110 = sphi 0, %s96
      %s114 = sphi 0, %s114
      %s116 = sphi 0, %s114
      %s117 = sphi 0, %s116
      %s131 = sphi 0, %s117
      %s135 = sphi 0, %s135
      %s137 = sphi 0, %s135
      %s138 = sphi 0, %s137
      %s152 = sphi 0, %s138
      %s156 = sphi 0, %s156
      %s158 = sphi 0, %s156
      %s159 = sphi 0, %s158
      %s173 = sphi 0, %s159
      %s179 = sphi 0, %s181
      %s182 = sphi 0, %s179
      %s183 = sphi 0, %s182
      %s199 = sphi 0, %s183
    $region4: #{tpu_custom_call.1} parent=1 // loop_header_branch
      %20 = sbr.rel (%p18) target = $region8
    $region5: #{tpu_custom_call.1} parent=1 // loop_body
      %s22 = ssub.s32 %s17, 1
      %s23 = ssub.s32 %s17, 2
      %s24 = sadd.s32 %s17, 1
      %s25 = ssub.s32 %s17, %s24
      %p26 = scmp.eq.s32.totalorder %s25, 0
      %s28 = sadd.s32 %s27, 1
      %s29 = scalar_select %p26, %s27, %s28
      %p32 = pneg %p26
      %p33 = scmp.eq.s32.totalorder %s17, 1
      %p34 = por %p32, %p33
      %p35 = scmp.ne.s32.totalorder %s27, %s30
      %p36 = scmp.eq.s32.totalorder %s17, 0
      %p37 = por %p35, %p36
      %p38 = scmp.ne.s32.totalorder %s27, %s30
      %p39 = scmp.eq.s32.totalorder %s22, 1
      %p40 = por %p38, %p39
      %p41 = scmp.ne.s32.totalorder %s30, %s31
      %p42 = scmp.eq.s32.totalorder %s22, 0
      %p43 = por %p41, %p42
      %p44 = scmp.ne.s32.totalorder %s30, %s31
      %p45 = scmp.eq.s32.totalorder %s23, 1
      %p46 = por %p44, %p45
      %p48 = scmp.ne.s32.totalorder %s31, %s47
      %p49 = scmp.eq.s32.totalorder %s23, 0
      %p50 = por %p48, %p49
      %s52 = sadd.s32 %s51, 1
      %p55 = scmp.eq.s32.totalorder %s17, 1
      %p56 = scmp.ne.s32.totalorder %s51, %s53
      %p57 = scmp.eq.s32.totalorder %s17, 0
      %p58 = por %p56, %p57
      %p59 = scmp.ne.s32.totalorder %s51, %s53
      %p60 = scmp.eq.s32.totalorder %s22, 1
      %p61 = por %p59, %p60
      %p62 = scmp.ne.s32.totalorder %s53, %s54
      %p63 = scmp.eq.s32.totalorder %s22, 0
      %p64 = por %p62, %p63
      %p65 = scmp.ne.s32.totalorder %s53, %s54
      %p66 = scmp.eq.s32.totalorder %s23, 1
      %p67 = por %p65, %p66
      %p69 = scmp.ne.s32.totalorder %s54, %s68
      %p70 = scmp.eq.s32.totalorder %s23, 0
      %p71 = por %p69, %p70
      %s73 = sadd.s32 %s72, 1
      %p76 = scmp.eq.s32.totalorder %s17, 1
      %p77 = scmp.ne.s32.totalorder %s72, %s74
      %p78 = scmp.eq.s32.totalorder %s17, 0
      %p79 = por %p77, %p78
      %p80 = scmp.ne.s32.totalorder %s72, %s74
      %p81 = scmp.eq.s32.totalorder %s22, 1
      %p82 = por %p80, %p81
      %p83 = scmp.ne.s32.totalorder %s74, %s75
      %p84 = scmp.eq.s32.totalorder %s22, 0
      %p85 = por %p83, %p84
      %p86 = scmp.ne.s32.totalorder %s74, %s75
      %p87 = scmp.eq.s32.totalorder %s23, 1
      %p88 = por %p86, %p87
      %p90 = scmp.ne.s32.totalorder %s75, %s89
      %p91 = scmp.eq.s32.totalorder %s23, 0
      %p92 = por %p90, %p91
      %s94 = sadd.s32 %s93, 1
      %p97 = scmp.eq.s32.totalorder %s17, 1
      %p98 = scmp.ne.s32.totalorder %s93, %s95
      %p99 = scmp.eq.s32.totalorder %s17, 0
      %p100 = por %p98, %p99
      %p101 = scmp.ne.s32.totalorder %s93, %s95
      %p102 = scmp.eq.s32.totalorder %s22, 1
      %p103 = por %p101, %p102
      %p104 = scmp.ne.s32.totalorder %s95, %s96
      %p105 = scmp.eq.s32.totalorder %s22, 0
      %p106 = por %p104, %p105
      %p107 = scmp.ne.s32.totalorder %s95, %s96
      %p108 = scmp.eq.s32.totalorder %s23, 1
      %p109 = por %p107, %p108
      %p111 = scmp.ne.s32.totalorder %s96, %s110
      %p112 = scmp.eq.s32.totalorder %s23, 0
      %p113 = por %p111, %p112
      %s115 = sadd.s32 %s114, 1
      %p118 = scmp.eq.s32.totalorder %s17, 1
      %p119 = scmp.ne.s32.totalorder %s114, %s116
      %p120 = scmp.eq.s32.totalorder %s17, 0
      %p121 = por %p119, %p120
      %p122 = scmp.ne.s32.totalorder %s114, %s116
      %p123 = scmp.eq.s32.totalorder %s22, 1
      %p124 = por %p122, %p123
      %p125 = scmp.ne.s32.totalorder %s116, %s117
      %p126 = scmp.eq.s32.totalorder %s22, 0
      %p127 = por %p125, %p126
      %p128 = scmp.ne.s32.totalorder %s116, %s117
      %p129 = scmp.eq.s32.totalorder %s23, 1
      %p130 = por %p128, %p129
      %p132 = scmp.ne.s32.totalorder %s117, %s131
      %p133 = scmp.eq.s32.totalorder %s23, 0
      %p134 = por %p132, %p133
      %s136 = sadd.s32 %s135, 1
      %p139 = scmp.eq.s32.totalorder %s17, 1
      %p140 = scmp.ne.s32.totalorder %s135, %s137
      %p141 = scmp.eq.s32.totalorder %s17, 0
      %p142 = por %p140, %p141
      %p143 = scmp.ne.s32.totalorder %s135, %s137
      %p144 = scmp.eq.s32.totalorder %s22, 1
      %p145 = por %p143, %p144
      %p146 = scmp.ne.s32.totalorder %s137, %s138
      %p147 = scmp.eq.s32.totalorder %s22, 0
      %p148 = por %p146, %p147
      %p149 = scmp.ne.s32.totalorder %s137, %s138
      %p150 = scmp.eq.s32.totalorder %s23, 1
      %p151 = por %p149, %p150
      %p153 = scmp.ne.s32.totalorder %s138, %s152
      %p154 = scmp.eq.s32.totalorder %s23, 0
      %p155 = por %p153, %p154
      %s157 = sadd.s32 %s156, 1
      %p160 = scmp.eq.s32.totalorder %s17, 1
      %p161 = scmp.ne.s32.totalorder %s156, %s158
      %p162 = scmp.eq.s32.totalorder %s17, 0
      %p163 = por %p161, %p162
      %p164 = scmp.ne.s32.totalorder %s156, %s158
      %p165 = scmp.eq.s32.totalorder %s22, 1
      %p166 = por %p164, %p165
      %p167 = scmp.ne.s32.totalorder %s158, %s159
      %p168 = scmp.eq.s32.totalorder %s22, 0
      %p169 = por %p167, %p168
      %p170 = scmp.ne.s32.totalorder %s158, %s159
      %p171 = scmp.eq.s32.totalorder %s23, 1
      %p172 = por %p170, %p171
      %p174 = scmp.ne.s32.totalorder %s159, %s173
      %p175 = scmp.eq.s32.totalorder %s23, 0
      %p176 = por %p174, %p175
      %s177 = ssub.s32 %s17, %s24
      %p178 = scmp.eq.s32.totalorder %s177, 0
      %s180 = sadd.s32 %s179, 1
      %s181 = scalar_select %p178, %s179, %s180
      %p184 = pneg %p178
      %p185 = scmp.eq.s32.totalorder %s17, 1
      %p186 = por %p184, %p185
      %p187 = scmp.ne.s32.totalorder %s179, %s182
      %p188 = scmp.eq.s32.totalorder %s17, 0
      %p189 = por %p187, %p188
      %p190 = scmp.ne.s32.totalorder %s179, %s182
      %p191 = scmp.eq.s32.totalorder %s22, 1
      %p192 = por %p190, %p191
      %p193 = scmp.ne.s32.totalorder %s182, %s183
      %p194 = scmp.eq.s32.totalorder %s22, 0
      %p195 = por %p193, %p194
      %p196 = scmp.ne.s32.totalorder %s182, %s183
      %p197 = scmp.eq.s32.totalorder %s23, 1
      %p198 = por %p196, %p197
      %p200 = scmp.ne.s32.totalorder %s183, %s199
      %p201 = scmp.eq.s32.totalorder %s23, 0
      %p202 = por %p200, %p201
      %p203 = scmp.le.s32.totalorder 1, %s17
      %p204 = scmp.lt.s32.totalorder %s17, 3
      %p205 = pnand %p203, %p204
      %p206 = pneg %p205
      // Predicated region
      $region9: #{tpu_custom_call.1} parent=5 // pred_check
        _
      $region10: #{tpu_custom_call.1} parent=5 // pred_check_branch
        %208 = sbr.rel (%p205) target = $region12
      $region11: #{tpu_custom_call.1} parent=5 // pred_region
        %s209 = ssub.s32 %s17, 1
        // Predicated region
        $region13: #{tpu_custom_call.1} parent=11 // pred_check
          %p210 = pneg %p64
        $region14: #{tpu_custom_call.1} parent=11 // pred_check_branch
          %212 = sbr.rel (%p210) target = $region16
        $region15: #{tpu_custom_call.1} parent=11 // pred_region
          _
        $region16: #{tpu_custom_call.1} parent=11 // pred_fallthru
          _
        // Predicated region
        $region17: #{tpu_custom_call.1} parent=11 // pred_check
          %p213 = pneg %p85
        $region18: #{tpu_custom_call.1} parent=11 // pred_check_branch
          %215 = sbr.rel (%p213) target = $region20
        $region19: #{tpu_custom_call.1} parent=11 // pred_region
          _
        $region20: #{tpu_custom_call.1} parent=11 // pred_fallthru
          _
        // Predicated region
        $region21: #{tpu_custom_call.1} parent=11 // pred_check
          %p216 = pneg %p106
        $region22: #{tpu_custom_call.1} parent=11 // pred_check_branch
          %218 = sbr.rel (%p216) target = $region24
        $region23: #{tpu_custom_call.1} parent=11 // pred_region
          _
        $region24: #{tpu_custom_call.1} parent=11 // pred_fallthru
          _
        // Predicated region
        $region25: #{tpu_custom_call.1} parent=11 // pred_check
          %p219 = pneg %p127
        $region26: #{tpu_custom_call.1} parent=11 // pred_check_branch
          %221 = sbr.rel (%p219) target = $region28
        $region27: #{tpu_custom_call.1} parent=11 // pred_region
          _
        $region28: #{tpu_custom_call.1} parent=11 // pred_fallthru
          _
        // Predicated region
        $region29: #{tpu_custom_call.1} parent=11 // pred_check
          %p222 = pneg %p148
        $region30: #{tpu_custom_call.1} parent=11 // pred_check_branch
          %224 = sbr.rel (%p222) target = $region32
        $region31: #{tpu_custom_call.1} parent=11 // pred_region
          _
        $region32: #{tpu_custom_call.1} parent=11 // pred_fallthru
          _
        // Predicated region
        $region33: #{tpu_custom_call.1} parent=11 // pred_check
          %p225 = pneg %p169
        $region34: #{tpu_custom_call.1} parent=11 // pred_check_branch
          %227 = sbr.rel (%p225) target = $region36
        $region35: #{tpu_custom_call.1} parent=11 // pred_region
          _
        $region36: #{tpu_custom_call.1} parent=11 // pred_fallthru
          _
      $region12: #{tpu_custom_call.1} parent=5 // pred_fallthru
        _
      %p228 = scmp.lt.s32.totalorder %s17, 2
      // Predicated region
      $region37: #{tpu_custom_call.1} parent=5 // pred_check
        %p229 = pneg %p228
      $region38: #{tpu_custom_call.1} parent=5 // pred_check_branch
        %231 = sbr.rel (%p229) target = $region40
      $region39: #{tpu_custom_call.1} parent=5 // pred_region
        // Predicated region
        $region41: #{tpu_custom_call.1} parent=39 // pred_check
          %p232 = pneg %p37
        $region42: #{tpu_custom_call.1} parent=39 // pred_check_branch
          %234 = sbr.rel (%p232) target = $region44
        $region43: #{tpu_custom_call.1} parent=39 // pred_region
          %s235 = smul.u32 16, %s17
          %p236 = scmp.lt.s32.totalorder %s235, 31
          %s237 = scalar_select %p236, %s235, 31
          %s238 = smul.addr %s237, 4
          %s239 = scalar_lea.vmem %s0, %s238
          %s240 = smul.u32 16, %s17
        $region44: #{tpu_custom_call.1} parent=39 // pred_fallthru
          _
      $region40: #{tpu_custom_call.1} parent=5 // pred_fallthru
        _
      %p241 = scmp.le.s32.totalorder 1, %s17
      %p242 = scmp.lt.s32.totalorder %s17, 3
      %p243 = pnand %p241, %p242
      %p244 = pneg %p243
      // Predicated region
      $region45: #{tpu_custom_call.1} parent=5 // pred_check
        _
      $region46: #{tpu_custom_call.1} parent=5 // pred_check_branch
        %246 = sbr.rel (%p243) target = $region48
      $region47: #{tpu_custom_call.1} parent=5 // pred_region
        %s247 = ssub.s32 %s17, 1
        %s248 = smul.u32 16, %s22
        %p249 = scmp.lt.s32.totalorder %s248, 31
        %s250 = scalar_select %p249, %s248, 31
        %s251 = smul.addr %s250, 4
        %s252 = scalar_lea.vmem %s0, %s251
        %p253 = pneg %p43
        %p254 = pneg %p40
        %p255 = pneg %p64
        %p256 = pneg %p61
        %p257 = pneg %p85
        %p258 = pneg %p82
        %p259 = pneg %p106
        %p260 = pneg %p103
        %p261 = pneg %p127
        %p262 = pneg %p124
        %p263 = pneg %p148
        %p264 = pneg %p145
        %p265 = pneg %p169
        %p266 = pneg %p166
        %p267 = pneg %p195
        %p268 = pneg %p192
        %s269 = sand.u32 %s182, 1
        %s270 = scalar_lea.sflag [#allocation4], %s269
        %s271 = sand.u32 %s182, 1
        %s272 = scalar_lea.vmem [#allocation3], %s271
        %s273 = smul.u32 16, %s22
        %p274 = scmp.lt.s32.totalorder %s273, 31
        %s275 = scalar_select %p274, %s273, 31
        %s276 = smul.addr %s275, 4
        %s277 = scalar_lea.vmem %s0, %s276
        %s278 = smul.u32 16, %s22
        %v280 = vld [vmem:[%s277] sm:$0xf]
        %v281 = vld [vmem:[%s277 + $0x4] sm:$0xf]
        %v282 = vld [vmem:[%s277 + $0x8] sm:$0xf]
        %v283 = vld [vmem:[%s277 + $0xc] sm:$0xf]
        %v284 = vld [vmem:[%s277 + $0x10] sm:$0xf]
        %v285 = vld [vmem:[%s277 + $0x14] sm:$0xf]
        %v286 = vld [vmem:[%s277 + $0x18] sm:$0xf]
        %v287 = vld [vmem:[%s277 + $0x1c] sm:$0xf]
        %v288 = vld [vmem:[%s277 + $0x20] sm:$0xf]
        %v289 = vld [vmem:[%s277 + $0x24] sm:$0xf]
        %v290 = vld [vmem:[%s277 + $0x28] sm:$0xf]
        %v291 = vld [vmem:[%s277 + $0x2c] sm:$0xf]
        %v292 = vld [vmem:[%s277 + $0x30] sm:$0xf]
        %v293 = vld [vmem:[%s277 + $0x34] sm:$0xf]
        %v294 = vld [vmem:[%s277 + $0x38] sm:$0xf]
        %v295 = vld [vmem:[%s277 + $0x3c] sm:$0xf]
        %v296 = vld [vmem:[%s1] sm:$0xf]
        %v297 = vld [vmem:[%s1 + $0x4] sm:$0xf]
        %v298 = vld [vmem:[%s1 + $0x8] sm:$0xf]
        %v299 = vld [vmem:[%s1 + $0xc] sm:$0xf]
        %v300 = vld [vmem:[%s1 + $0x10] sm:$0xf]
        %v301 = vld [vmem:[%s1 + $0x14] sm:$0xf]
        %v302 = vld [vmem:[%s2] sm:$0x1]
        %v304 = vlaneseq
        %v305 = vshrl.u32 %v304, 7
        %v306 = vsub.s32 0, %v305
        %v307 = vrot.slane %v302, %v306
        %v325 = vunpack.c.l.b16 %v280
        %v326 = vunpack.c.l.b16 %v281
        %v327 = vunpack.c.l.b16 %v282
        %v328 = vunpack.c.l.b16 %v283
        %v329 = vunpack.c.l.b16 %v284
        %v330 = vunpack.c.l.b16 %v285
        %v331 = vunpack.c.l.b16 %v286
        %v332 = vunpack.c.l.b16 %v287
        %v333 = vunpack.c.l.b16 %v288
        %v334 = vunpack.c.l.b16 %v289
        %v335 = vunpack.c.l.b16 %v290
        %v336 = vunpack.c.l.b16 %v291
        %v337 = vunpack.c.l.b16 %v292
        %v338 = vunpack.c.l.b16 %v293
        %v339 = vunpack.c.l.b16 %v294
        %v340 = vunpack.c.l.b16 %v295
        %v341 = vpack.c.b16 %v326, %v325
        %v342 = vpack.c.b16 %v328, %v327
        %v343 = vpack.c.b16 %v330, %v329
        %v344 = vpack.c.b16 %v332, %v331
        %v345 = vpack.c.b16 %v334, %v333
        %v346 = vpack.c.b16 %v336, %v335
        %v347 = vpack.c.b16 %v338, %v337
        %v348 = vpack.c.b16 %v340, %v339
        %v355 = vunpack.c.l.b16 %v296
        %v356 = vunpack.c.l.b16 %v297
        %v357 = vunpack.c.l.b16 %v298
        %v358 = vunpack.c.l.b16 %v299
        %v359 = vunpack.c.l.b16 %v300
        %v360 = vunpack.c.l.b16 %v301
        %v361 = vpack.c.b16 %v356, %v355
        %v362 = vpack.c.b16 %v358, %v357
        %v363 = vpack.c.b16 %v360, %v359
        %vm367 = vcmask 392192
        %v369 = vsel %vm367, %v341, 0
        %v372 = vsel %vm367, %v342, 0
        %v375 = vsel %vm367, %v343, 0
        %v378 = vsel %vm367, %v344, 0
        %v381 = vsel %vm367, %v345, 0
        %v384 = vsel %vm367, %v346, 0
        %v387 = vsel %vm367, %v347, 0
        %v390 = vsel %vm367, %v348, 0
        %392 = vmatprep.subr.bf16.mxu0 0
        %393 = vmatpush1.bf16.msra.mxu0 0
        %394 = vmatprep.subr.bf16.mxu0 0
        %395 = vmatpush1.bf16.msra.mxu0 0
        %396 = vmatprep.subr.bf16.mxu0 0
        %397 = vmatpush1.bf16.msra.mxu0 0
        %398 = vmatprep.subr.bf16.mxu0 0
        %399 = vmatpush1.bf16.msra.mxu0 0
        %400 = vmatprep.subr.bf16.mxu0 0
        %401 = vmatpush1.bf16.msra.mxu0 0
        %402 = vmatprep.subr.bf16.mxu0 0
        %403 = vmatpush1.bf16.msra.mxu0 %v363
        %404 = vmatprep.subr.bf16.mxu0 0
        %405 = vmatpush1.bf16.msra.mxu0 %v362
        %406 = vmatprep.subr.bf16.mxu0 0
        %407 = vmatpush1.bf16.msra.mxu0 %v361
        %408 = vmatprep.subr.bf16.mxu0 0
        %409 = vmatpush2.bf16.msra.mxu0 0
        %410 = vmatprep.subr.bf16.mxu0 0
        %411 = vmatpush2.bf16.msra.mxu0 0
        %412 = vmatprep.subr.bf16.mxu0 0
        %413 = vmatpush2.bf16.msra.mxu0 0
        %414 = vmatprep.subr.bf16.mxu0 0
        %415 = vmatpush2.bf16.msra.mxu0 0
        %416 = vmatprep.subr.bf16.mxu0 0
        %417 = vmatpush2.bf16.msra.mxu0 0
        %418 = vmatprep.subr.bf16.mxu0 0
        %419 = vmatpush2.bf16.msra.mxu0 0
        %420 = vmatprep.subr.bf16.mxu0 0
        %421 = vmatpush2.bf16.msra.mxu0 0
        %422 = vmatprep.subr.bf16.mxu0 0
        %423 = vmatpush2.bf16.msra.mxu0 0
        %424 = vmatprep.mubr.bf16.mxu0 0
        %425 = vmatmul.mubr.bf16.gmra.mxu0 %v369
        %v426 = vpop.f32.mrf.mxu0
        %v427 = vadd.f32 %v307, %v426
        %v428 = vpop.f32.mrf.mxu0
        %v429 = vpop.f32.mrf.mxu0
        %v430 = vadd.f32 %v307, %v429
        %v431 = vpop.f32.mrf.mxu0
        %432 = vmatprep.mubr.bf16.mxu0 0
        %433 = vmatmul.mubr.bf16.gmra.mxu0 %v372
        %v434 = vpop.f32.mrf.mxu0
        %v435 = vadd.f32 %v307, %v434
        %v436 = vpop.f32.mrf.mxu0
        %v437 = vpop.f32.mrf.mxu0
        %v438 = vadd.f32 %v307, %v437
        %v439 = vpop.f32.mrf.mxu0
        %440 = vmatprep.mubr.bf16.mxu0 0
        %441 = vmatmul.mubr.bf16.gmra.mxu0 %v375
        %v442 = vpop.f32.mrf.mxu0
        %v443 = vadd.f32 %v307, %v442
        %v444 = vpop.f32.mrf.mxu0
        %v445 = vpop.f32.mrf.mxu0
        %v446 = vadd.f32 %v307, %v445
        %v447 = vpop.f32.mrf.mxu0
        %448 = vmatprep.mubr.bf16.mxu0 0
        %449 = vmatmul.mubr.bf16.gmra.mxu0 %v378
        %v450 = vpop.f32.mrf.mxu0
        %v451 = vadd.f32 %v307, %v450
        %v452 = vpop.f32.mrf.mxu0
        %v453 = vpop.f32.mrf.mxu0
        %v454 = vadd.f32 %v307, %v453
        %v455 = vpop.f32.mrf.mxu0
        %456 = vmatprep.mubr.bf16.mxu0 0
        %457 = vmatmul.mubr.bf16.gmra.mxu0 %v381
        %v458 = vpop.f32.mrf.mxu0
        %v459 = vadd.f32 %v307, %v458
        %v460 = vpop.f32.mrf.mxu0
        %v461 = vpop.f32.mrf.mxu0
        %v462 = vadd.f32 %v307, %v461
        %v463 = vpop.f32.mrf.mxu0
        %464 = vmatprep.mubr.bf16.mxu0 0
        %465 = vmatmul.mubr.bf16.gmra.mxu0 %v384
        %v466 = vpop.f32.mrf.mxu0
        %v467 = vadd.f32 %v307, %v466
        %v468 = vpop.f32.mrf.mxu0
        %v469 = vpop.f32.mrf.mxu0
        %v470 = vadd.f32 %v307, %v469
        %v471 = vpop.f32.mrf.mxu0
        %472 = vmatprep.mubr.bf16.mxu0 0
        %473 = vmatmul.mubr.bf16.gmra.mxu0 %v387
        %v474 = vpop.f32.mrf.mxu0
        %v475 = vadd.f32 %v307, %v474
        %v476 = vpop.f32.mrf.mxu0
        %v477 = vpop.f32.mrf.mxu0
        %v478 = vadd.f32 %v307, %v477
        %v479 = vpop.f32.mrf.mxu0
        %480 = vmatprep.mubr.bf16.mxu0 0
        %481 = vmatmul.mubr.bf16.gmra.mxu0 %v390
        %v482 = vpop.f32.mrf.mxu0
        %v483 = vadd.f32 %v307, %v482
        %v484 = vpop.f32.mrf.mxu0
        %v485 = vpop.f32.mrf.mxu0
        %v486 = vadd.f32 %v307, %v485
        %v487 = vpop.f32.mrf.mxu0
        %488 = vdwg.mxu0
        %v489 = vmax.f32 %v427, 0.0
        %v490 = vmax.f32 %v430, 0.0
        %v491 = vmax.f32 %v435, 0.0
        %v492 = vmax.f32 %v438, 0.0
        %v493 = vmax.f32 %v443, 0.0
        %v494 = vmax.f32 %v446, 0.0
        %v495 = vmax.f32 %v451, 0.0
        %v496 = vmax.f32 %v454, 0.0
        %v497 = vmax.f32 %v459, 0.0
        %v498 = vmax.f32 %v462, 0.0
        %v499 = vmax.f32 %v467, 0.0
        %v500 = vmax.f32 %v470, 0.0
        %v501 = vmax.f32 %v475, 0.0
        %v502 = vmax.f32 %v478, 0.0
        %v503 = vmax.f32 %v483, 0.0
        %v504 = vmax.f32 %v486, 0.0
        %v505 = vpack.c.bf16 %v490, %v489
        %v506 = vpack.c.bf16 %v492, %v491
        %v507 = vpack.c.bf16 %v494, %v493
        %v508 = vpack.c.bf16 %v496, %v495
        %v509 = vpack.c.bf16 %v498, %v497
        %v510 = vpack.c.bf16 %v500, %v499
        %v511 = vpack.c.bf16 %v502, %v501
        %v512 = vpack.c.bf16 %v504, %v503
        %v513 = vld [vmem:[%s3] sm:$0xf]
        %v514 = vld [vmem:[%s3 + $0x4] sm:$0xf]
        %v515 = vld [vmem:[%s3 + $0x8] sm:$0xf]
        %v516 = vld [vmem:[%s3 + $0xc] sm:$0xf]
        %v517 = vld [vmem:[%s3 + $0x10] sm:$0xf]
        %v518 = vld [vmem:[%s3 + $0x14] sm:$0xf]
        %v519 = vld [vmem:[%s3 + $0x18] sm:$0xf]
        %v520 = vld [vmem:[%s3 + $0x1c] sm:$0xf]
        %v521 = vld [vmem:[%s3 + $0x20] sm:$0xf]
        %v522 = vld [vmem:[%s3 + $0x24] sm:$0xf]
        %v523 = vld [vmem:[%s3 + $0x28] sm:$0xf]
        %v524 = vld [vmem:[%s3 + $0x2c] sm:$0xf]
        %v525 = vld [vmem:[%s3 + $0x30] sm:$0xf]
        %v526 = vld [vmem:[%s3 + $0x34] sm:$0xf]
        %v527 = vld [vmem:[%s3 + $0x38] sm:$0xf]
        %v528 = vld [vmem:[%s3 + $0x3c] sm:$0xf]
        %v529 = vld [vmem:[%s4] sm:$0x1]
        %v531 = vlaneseq
        %v532 = vshrl.u32 %v531, 7
        %v533 = vsub.s32 0, %v532
        %v534 = vrot.slane %v529, %v533
        %v552 = vunpack.c.l.b16 %v513
        %v553 = vunpack.c.l.b16 %v514
        %v554 = vunpack.c.l.b16 %v515
        %v555 = vunpack.c.l.b16 %v516
        %v556 = vunpack.c.l.b16 %v517
        %v557 = vunpack.c.l.b16 %v518
        %v558 = vunpack.c.l.b16 %v519
        %v559 = vunpack.c.l.b16 %v520
        %v560 = vunpack.c.l.b16 %v521
        %v561 = vunpack.c.l.b16 %v522
        %v562 = vunpack.c.l.b16 %v523
        %v563 = vunpack.c.l.b16 %v524
        %v564 = vunpack.c.l.b16 %v525
        %v565 = vunpack.c.l.b16 %v526
        %v566 = vunpack.c.l.b16 %v527
        %v567 = vunpack.c.l.b16 %v528
        %v568 = vpack.c.b16 %v553, %v552
        %v569 = vpack.c.b16 %v555, %v554
        %v570 = vpack.c.b16 %v557, %v556
        %v571 = vpack.c.b16 %v559, %v558
        %v572 = vpack.c.b16 %v561, %v560
        %v573 = vpack.c.b16 %v563, %v562
        %v574 = vpack.c.b16 %v565, %v564
        %v575 = vpack.c.b16 %v567, %v566
        %584 = vmatprep.subr.bf16.mxu0 0
        %585 = vmatpush1.bf16.msra.mxu0 %v575
        %586 = vmatprep.subr.bf16.mxu0 0
        %587 = vmatpush1.bf16.msra.mxu0 %v574
        %588 = vmatprep.subr.bf16.mxu0 0
        %589 = vmatpush1.bf16.msra.mxu0 %v573
        %590 = vmatprep.subr.bf16.mxu0 0
        %591 = vmatpush1.bf16.msra.mxu0 %v572
        %592 = vmatprep.subr.bf16.mxu0 0
        %593 = vmatpush1.bf16.msra.mxu0 %v571
        %594 = vmatprep.subr.bf16.mxu0 0
        %595 = vmatpush1.bf16.msra.mxu0 %v570
        %596 = vmatprep.subr.bf16.mxu0 0
        %597 = vmatpush1.bf16.msra.mxu0 %v569
        %598 = vmatprep.subr.bf16.mxu0 0
        %599 = vmatpush1.bf16.msra.mxu0 %v568
        %600 = vmatprep.subr.bf16.mxu0 0
        %601 = vmatpush2.bf16.msra.mxu0 0
        %602 = vmatprep.subr.bf16.mxu0 0
        %603 = vmatpush2.bf16.msra.mxu0 0
        %604 = vmatprep.subr.bf16.mxu0 0
        %605 = vmatpush2.bf16.msra.mxu0 0
        %606 = vmatprep.subr.bf16.mxu0 0
        %607 = vmatpush2.bf16.msra.mxu0 0
        %608 = vmatprep.subr.bf16.mxu0 0
        %609 = vmatpush2.bf16.msra.mxu0 0
        %610 = vmatprep.subr.bf16.mxu0 0
        %611 = vmatpush2.bf16.msra.mxu0 0
        %612 = vmatprep.subr.bf16.mxu0 0
        %613 = vmatpush2.bf16.msra.mxu0 0
        %614 = vmatprep.subr.bf16.mxu0 0
        %615 = vmatpush2.bf16.msra.mxu0 0
        %616 = vmatprep.mubr.bf16.mxu0 0
        %617 = vmatmul.mubr.bf16.gmra.mxu0 %v505
        %v618 = vpop.f32.mrf.mxu0
        %v619 = vadd.f32 %v534, %v618
        %v620 = vpop.f32.mrf.mxu0
        %v621 = vpop.f32.mrf.mxu0
        %v622 = vadd.f32 %v534, %v621
        %v623 = vpop.f32.mrf.mxu0
        %624 = vmatprep.mubr.bf16.mxu0 0
        %625 = vmatmul.mubr.bf16.gmra.mxu0 %v506
        %v626 = vpop.f32.mrf.mxu0
        %v627 = vadd.f32 %v534, %v626
        %v628 = vpop.f32.mrf.mxu0
        %v629 = vpop.f32.mrf.mxu0
        %v630 = vadd.f32 %v534, %v629
        %v631 = vpop.f32.mrf.mxu0
        %632 = vmatprep.mubr.bf16.mxu0 0
        %633 = vmatmul.mubr.bf16.gmra.mxu0 %v507
        %v634 = vpop.f32.mrf.mxu0
        %v635 = vadd.f32 %v534, %v634
        %v636 = vpop.f32.mrf.mxu0
        %v637 = vpop.f32.mrf.mxu0
        %v638 = vadd.f32 %v534, %v637
        %v639 = vpop.f32.mrf.mxu0
        %640 = vmatprep.mubr.bf16.mxu0 0
        %641 = vmatmul.mubr.bf16.gmra.mxu0 %v508
        %v642 = vpop.f32.mrf.mxu0
        %v643 = vadd.f32 %v534, %v642
        %v644 = vpop.f32.mrf.mxu0
        %v645 = vpop.f32.mrf.mxu0
        %v646 = vadd.f32 %v534, %v645
        %v647 = vpop.f32.mrf.mxu0
        %648 = vmatprep.mubr.bf16.mxu0 0
        %649 = vmatmul.mubr.bf16.gmra.mxu0 %v509
        %v650 = vpop.f32.mrf.mxu0
        %v651 = vadd.f32 %v534, %v650
        %v652 = vpop.f32.mrf.mxu0
        %v653 = vpop.f32.mrf.mxu0
        %v654 = vadd.f32 %v534, %v653
        %v655 = vpop.f32.mrf.mxu0
        %656 = vmatprep.mubr.bf16.mxu0 0
        %657 = vmatmul.mubr.bf16.gmra.mxu0 %v510
        %v658 = vpop.f32.mrf.mxu0
        %v659 = vadd.f32 %v534, %v658
        %v660 = vpop.f32.mrf.mxu0
        %v661 = vpop.f32.mrf.mxu0
        %v662 = vadd.f32 %v534, %v661
        %v663 = vpop.f32.mrf.mxu0
        %664 = vmatprep.mubr.bf16.mxu0 0
        %665 = vmatmul.mubr.bf16.gmra.mxu0 %v511
        %v666 = vpop.f32.mrf.mxu0
        %v667 = vadd.f32 %v534, %v666
        %v668 = vpop.f32.mrf.mxu0
        %v669 = vpop.f32.mrf.mxu0
        %v670 = vadd.f32 %v534, %v669
        %v671 = vpop.f32.mrf.mxu0
        %672 = vmatprep.mubr.bf16.mxu0 0
        %673 = vmatmul.mubr.bf16.gmra.mxu0 %v512
        %v674 = vpop.f32.mrf.mxu0
        %v675 = vadd.f32 %v534, %v674
        %v676 = vpop.f32.mrf.mxu0
        %v677 = vpop.f32.mrf.mxu0
        %v678 = vadd.f32 %v534, %v677
        %v679 = vpop.f32.mrf.mxu0
        %680 = vdwg.mxu0
        %v681 = vmax.f32 %v619, 0.0
        %v682 = vmax.f32 %v622, 0.0
        %v683 = vmax.f32 %v627, 0.0
        %v684 = vmax.f32 %v630, 0.0
        %v685 = vmax.f32 %v635, 0.0
        %v686 = vmax.f32 %v638, 0.0
        %v687 = vmax.f32 %v643, 0.0
        %v688 = vmax.f32 %v646, 0.0
        %v689 = vmax.f32 %v651, 0.0
        %v690 = vmax.f32 %v654, 0.0
        %v691 = vmax.f32 %v659, 0.0
        %v692 = vmax.f32 %v662, 0.0
        %v693 = vmax.f32 %v667, 0.0
        %v694 = vmax.f32 %v670, 0.0
        %v695 = vmax.f32 %v675, 0.0
        %v696 = vmax.f32 %v678, 0.0
        %v697 = vld [vmem:[%s5] sm:$0x1]
        %v698 = vpack.c.bf16 %v682, %v681
        %v699 = vpack.c.bf16 %v684, %v683
        %v700 = vpack.c.bf16 %v686, %v685
        %v701 = vpack.c.bf16 %v688, %v687
        %v702 = vpack.c.bf16 %v690, %v689
        %v703 = vpack.c.bf16 %v692, %v691
        %v704 = vpack.c.bf16 %v694, %v693
        %v705 = vpack.c.bf16 %v696, %v695
        %s706 = sld [smem:[#allocation2]]
        %v707 = vstv %s706
        %708 = vmatprep.subr.bf16.mxu0 0
        %709 = vmatpush1.bf16.xpose.msra.mxu0 %v705
        %710 = vmatprep.subr.bf16.mxu0 0
        %711 = vmatpush1.bf16.xpose.msra.mxu0 %v704
        %712 = vmatprep.subr.bf16.mxu0 0
        %713 = vmatpush1.bf16.xpose.msra.mxu0 %v703
        %714 = vmatprep.subr.bf16.mxu0 0
        %715 = vmatpush1.bf16.xpose.msra.mxu0 %v702
        %716 = vmatprep.subr.bf16.mxu0 0
        %717 = vmatpush1.bf16.xpose.msra.mxu0 %v701
        %718 = vmatprep.subr.bf16.mxu0 0
        %719 = vmatpush1.bf16.xpose.msra.mxu0 %v700
        %720 = vmatprep.subr.bf16.mxu0 0
        %721 = vmatpush1.bf16.xpose.msra.mxu0 %v699
        %722 = vmatprep.subr.bf16.mxu0 0
        %723 = vmatpush1.bf16.xpose.msra.mxu0 %v698
        %724 = vmatprep.subr.bf16.mxu0 0
        %725 = vmatpush2.bf16.xpose.msra.mxu0 0
        %726 = vmatprep.subr.bf16.mxu0 0
        %727 = vmatpush2.bf16.xpose.msra.mxu0 0
        %728 = vmatprep.subr.bf16.mxu0 0
        %729 = vmatpush2.bf16.xpose.msra.mxu0 0
        %730 = vmatprep.subr.bf16.mxu0 0
        %731 = vmatpush2.bf16.xpose.msra.mxu0 0
        %732 = vmatprep.subr.bf16.mxu0 0
        %733 = vmatpush2.bf16.xpose.msra.mxu0 0
        %734 = vmatprep.subr.bf16.mxu0 0
        %735 = vmatpush2.bf16.xpose.msra.mxu0 0
        %736 = vmatprep.subr.bf16.mxu0 0
        %737 = vmatpush2.bf16.xpose.msra.mxu0 0
        %738 = vmatprep.subr.bf16.mxu0 0
        %739 = vmatpush2.bf16.xpose.msra.mxu0 0
        %740 = vmatprep.mubr.bf16.mxu0 0
        %741 = vmatmul.mubr.bf16.gmra.mxu0 %v697
        %v742 = vpop.f32.mrf.mxu0
        %v743 = vadd.f32 %v707, %v742
        %v744 = vpop.f32.mrf.mxu0
        %v745 = vpop.f32.mrf.mxu0
        %v746 = vpop.f32.mrf.mxu0
        %747 = vdwg.mxu0
        %748 = vst [vmem:[%s272] sm:$0x1] %v743
        %s749 = sand.u32 %s182, 1
        %s750 = scalar_lea.sflag [#allocation4], %s749
        %s751 = sand.u32 %s182, 1
        %s752 = scalar_lea.vmem [#allocation3], %s751
        // Predicated region
        $region49: #{tpu_custom_call.1} parent=47 // pred_check
          %p753 = pneg %p192
        $region50: #{tpu_custom_call.1} parent=47 // pred_check_branch
          %755 = sbr.rel (%p753) target = $region52
        $region51: #{tpu_custom_call.1} parent=47 // pred_region
          %s757 = ssub.s32 16, 16
          %758 = vsyncadd %s750, %s757
          %s759 = smul.addr %s22, 16
          %s760 = scalar_lea.hbm %s7, %s759
          %s762 = sshll.u32 %s752, 4
          %s763 = int_to_ptr.vmem [resolvable:$true] %s762
          %765 = dma.vmem_to_hbm [thread:$0]  %s763, 16, %s760, %s750
        $region52: #{tpu_custom_call.1} parent=47 // pred_fallthru
          _
      $region48: #{tpu_custom_call.1} parent=5 // pred_fallthru
        _
      %p766 = scmp.le.s32.totalorder 2, %s17
      // Predicated region
      $region53: #{tpu_custom_call.1} parent=5 // pred_check
        %p767 = pneg %p766
      $region54: #{tpu_custom_call.1} parent=5 // pred_check_branch
        %769 = sbr.rel (%p767) target = $region56
      $region55: #{tpu_custom_call.1} parent=5 // pred_region
        %s770 = ssub.s32 %s17, 2
        // Predicated region
        $region57: #{tpu_custom_call.1} parent=55 // pred_check
          %p771 = pneg %p198
        $region58: #{tpu_custom_call.1} parent=55 // pred_check_branch
          %773 = sbr.rel (%p771) target = $region60
        $region59: #{tpu_custom_call.1} parent=55 // pred_region
          %s774 = sand.u32 %s183, 1
          %s775 = scalar_lea.sflag [#allocation4], %s774
          %s776 = sand.u32 %s183, 1
          %s777 = scalar_lea.vmem [#allocation3], %s776
          %778 = dma.done %s775, 16
        $region60: #{tpu_custom_call.1} parent=55 // pred_fallthru
          _
      $region56: #{tpu_custom_call.1} parent=5 // pred_fallthru
        _
    $region6: #{tpu_custom_call.1} parent=1 // loop_footer
      %s21 = sadd.s32 1, %s17
    $region7: #{tpu_custom_call.1} parent=1 // loop_footer_branch
      %16 = sbr.rel target = $region3
    $region8: #{tpu_custom_call.1} parent=1 // loop_exit
      _
    %779 = vsyncpa [#allocation4], 1
    %s780 = scalar_lea.sflag [#allocation4], 1
    %781 = vsyncpa %s780, 1

</llo_original>
